<compile_context>
chip_gen: v7x
topology: tpu7x:2x2x1
jax: 0.10.0
libtpu: 0.0.40
codegen_flags: <defaults>
</compile_context>

<pallas_src>
import numpy as np
import jax
import jax.numpy as jnp
from jax.experimental import pallas as pl
from jax.experimental.pallas import tpu as pltpu


_LANE = 128  # f32 lane width


def _cdiv(a, b):
    return -(-a // b)


def _round_up(a, m):
    return _cdiv(a, m) * m


def _vmem_capacity_bytes():
    """Physical VMEM per TensorCore; conservative fallback if unavailable."""
    try:
        return int(pltpu.get_tpu_info().vmem_capacity_bytes)
    except Exception:
        return 64 << 20  # v7x per-TC size; safe lower bound for v5e/v6e too


# ----------------------------------------------------------------------------
# Pallas kernel: for each batch row in the block, (T_out,T_in) @ (T_in,tf).
# ----------------------------------------------------------------------------
def _interp_kernel(w_ref, x_ref, o_ref):
    # w_ref: (T_out, T_in) f32, resident in VMEM (same block every step).
    # x_ref: (tb, T_in, tf) native dtype.
    # o_ref: (tb, T_out, tf) output dtype (f32 by default).
    w = w_ref[...]
    for bi in range(x_ref.shape[0]):  # tb is static (block shape) -> unrolled
        x = x_ref[bi].astype(jnp.float32)  # in-VMEM cast; VPU slot has slack
        o_ref[bi] = jnp.dot(w, x, preferred_element_type=jnp.float32).astype(
            o_ref.dtype)


def _choose_tiles(b, t_in, t_out, f, in_itemsize, out_itemsize):
    """Pick (tb, tf) so the double-buffered in+out blocks fill ~1/3 of VMEM."""
    phys = _vmem_capacity_bytes()
    budget = min(phys // 3, 48 << 20)  # bytes for double-buffered blocks
    # Double-buffered bytes per lane, per batch row (input block + output block).
    per_lane_row = 2 * (t_in * in_itemsize + t_out * out_itemsize)

    # Lane tile: full F if affordable; else a multiple of 128 sized to
    # minimize last-tile padding.
    max_tf = max(_LANE, (budget // per_lane_row) // _LANE * _LANE)
    if f <= max_tf:
        tf = f
    else:
        n_tiles = _cdiv(f, max_tf)
        tf = _round_up(_cdiv(f, n_tiles), _LANE)

    # Batch tile: fill the remaining budget.
    tb = max(1, min(b, budget // (per_lane_row * tf)))

    # Keep >= 2 grid blocks along a parallel axis (v7x has 2 TensorCores).
    if tb >= b and _cdiv(f, tf) == 1 and b >= 2:
        tb = _cdiv(b, 2)
    return tb, tf


def _pallas_interp(w, x, t_out, out_dtype):
    """x: [B, T_in, F] (native dtype) -> [B, T_out, F] out_dtype, linear interp
    along axis 1 via the (T_out, T_in) weight matrix w (f32)."""
    b, t_in, f = x.shape
    in_bytes = x.dtype.itemsize
    out_bytes = np.dtype(out_dtype).itemsize
    tb, tf = _choose_tiles(b, t_in, t_out, f, in_bytes, out_bytes)
    grid = (pl.cdiv(b, tb), pl.cdiv(f, tf))

    # Explicit scoped-VMEM limit so the default (16/32 MiB) never caps blocks.
    need = 2 * tb * tf * (t_in * in_bytes + t_out * out_bytes) \
        + 2 * t_out * t_in * 4
    vmem_limit = int(min(_vmem_capacity_bytes(), max(need + (4 << 20), 32 << 20)))

    return pl.pallas_call(
        _interp_kernel,
        out_shape=jax.ShapeDtypeStruct((b, t_out, f), out_dtype),
        grid=grid,
        in_specs=[
            # W stays resident in VMEM (same block index every step).
            pl.BlockSpec((t_out, t_in), lambda bi, fi: (0, 0)),
            # Batch-blocked + lane-tiled input block.
            pl.BlockSpec((tb, t_in, tf), lambda bi, fi: (bi, 0, fi)),
        ],
        out_specs=pl.BlockSpec((tb, t_out, tf), lambda bi, fi: (bi, 0, fi)),
        compiler_params=pltpu.CompilerParams(
            dimension_semantics=("parallel", "parallel"),
            vmem_limit_bytes=vmem_limit),
    )(w, x)


# ----------------------------------------------------------------------------
# Glue: build the [T_out, T_in] linear-interpolation weight matrix (host-side).
# ----------------------------------------------------------------------------
def _build_interp_weights(inp_timeline, out_seqlen):
    tl = np.asarray(inp_timeline, dtype=np.float64)
    t_in = tl.shape[0]
    w = np.zeros((out_seqlen, t_in), dtype=np.float32)
    if t_in == 1:               # guard: single sample -> hold value
        w[:, 0] = 1.0
        return jnp.asarray(w)
    t = np.arange(out_seqlen, dtype=np.float64)
    idx = np.clip(np.searchsorted(tl, t, side="right") - 1, 0, t_in - 2)
    left, right = tl[idx], tl[idx + 1]
    denom = np.where(right > left, right - left, 1.0)      # guard duplicates
    frac = np.clip((t - left) / denom, 0.0, 1.0)           # np.interp-like clamp
    rows = np.arange(out_seqlen)
    w[rows, idx] = (1.0 - frac).astype(np.float32)
    w[rows, idx + 1] = frac.astype(np.float32)
    return jnp.asarray(w)


# ----------------------------------------------------------------------------
# Interpolator forward (dict in -> dict out), temporal_axis = 1.
# ----------------------------------------------------------------------------
class Interpolator:
    def __init__(self, interp_type="linear", temporal_axis=1,
                 out_dtype=jnp.float32):
        if interp_type != "linear":
            # TODO(synk): only 'linear' (scipy interp1d kind) is implemented.
            raise ValueError("only interp_type='linear' is supported")
        if temporal_axis != 1:
            raise ValueError(
                "currently supporting only temporal_axis=1 (got {})".format(
                    temporal_axis))
        self.interp_type = interp_type
        self.temporal_axis = temporal_axis
        # out_dtype=jnp.bfloat16 halves the dominant HBM write traffic; the
        # PyTorch module outputs float32, so that stays the default.
        self.out_dtype = out_dtype
        print("Interpolator - running [{}]".format(self.interp_type))

    def __call__(self, inp, inp_timeline):
        orig_seqlen = list(inp.values())[0].shape[self.temporal_axis]
        timeline = np.asarray(inp_timeline)
        out_seqlen = int(timeline[-1]) + 1
        assert len(timeline) == orig_seqlen
        if orig_seqlen == out_seqlen:
            print("WARNING - Interpolator: interpolation was not operated.")
            return inp

        w_f32 = _build_interp_weights(timeline, out_seqlen)  # [T_out, T_in]

        interped = {}
        for k, v in inp.items():
            v = jnp.asarray(v)
            b, t_in = v.shape[0], v.shape[1]
            feat_shape = v.shape[2:]
            f = int(np.prod(feat_shape)) if feat_shape else 1

            if f < _LANE:
                # Lane-sparse output -> masked partial stores + per-call
                # dispatch overhead would dominate; let XLA handle tiny keys.
                y = jnp.einsum(
                    "oi,bi...->bo...", w_f32, v.astype(jnp.float32),
                    precision=jax.lax.Precision.HIGHEST,
                ).astype(self.out_dtype)
            else:
                # Layout-preserving flatten of trailing dims (no transpose,
                # no HBM copy); dtype cast happens inside the kernel.
                x = v.reshape(b, t_in, f)
                y = _pallas_interp(w_f32, x, out_seqlen, self.out_dtype)
                y = y.reshape((b, out_seqlen) + tuple(feat_shape))

            interped[k] = y
            # shape checks mirroring the PyTorch module
            for i in range(v.ndim):
                if i == self.temporal_axis:
                    assert interped[k].shape[i] == out_seqlen
                else:
                    assert interped[k].shape[i] == v.shape[i]
        return interped


# ----------------------------------------------------------------------------
# Demo / self-test
# ----------------------------------------------------------------------------
if __name__ == "__main__":
    key = jax.random.PRNGKey(0)
    k1, k2, k3 = jax.random.split(key, 3)

    B, T_IN, C, D = 2, 8, 4, 32
    # integer sample times; last one defines T_out = 22
    inp_timeline = jnp.array([0, 3, 6, 9, 12, 15, 18, 21], dtype=jnp.int32)

    inp = {
        # F = 128 -> Pallas path (batch-blocked, lane tile = full F)
        "feat": jax.random.normal(k1, (B, T_IN, C, D), dtype=jnp.float32),
        # F = 32  -> tiny / lane-sparse key routed to plain XLA einsum
        "pose": jax.random.normal(k2, (B, T_IN, D), dtype=jnp.float32),
        # int32 input -> exercises the in-kernel dtype cast (no wrapper astype)
        "count": jax.random.randint(k3, (B, T_IN, C, D), 0, 50, dtype=jnp.int32),
    }

    interp = Interpolator(interp_type="linear", temporal_axis=1)
    out = interp(inp, inp_timeline)
    out = jax.tree_util.tree_map(jax.block_until_ready, out)

    # reference check with np.interp along the temporal axis
    t_out = int(np.asarray(inp_timeline)[-1]) + 1
    out_t = np.arange(t_out, dtype=np.float64)
    in_t = np.asarray(inp_timeline, dtype=np.float64)
    ok = True
    for k, v in inp.items():
        v_np = np.asarray(v, dtype=np.float64)
        moved = np.moveaxis(v_np, 1, -1)               # [..., T_in]
        flat = moved.reshape(-1, v_np.shape[1])
        ref = np.stack([np.interp(out_t, in_t, row) for row in flat], axis=0)
        ref = np.moveaxis(ref.reshape(moved.shape[:-1] + (t_out,)), -1, 1)
        got = np.asarray(out[k], dtype=np.float64)
        if got.shape != ref.shape or out[k].dtype != jnp.float32:
            ok = False
        elif not np.allclose(got, ref, atol=1e-4, rtol=1e-4):
            ok = False

    if ok:
        print("KERNEL_OK")
    else:
        print("KERNEL_MISMATCH")
</pallas_src>

<mosaic_0001>
module attributes {stable_mosaic.version = 11 : i64} {
  func.func @_interp_kernel(%arg0: i32, %arg1: i32, %arg2: memref<22x8xf32, #tpu.memory_space<vmem>>, %arg3: memref<1x8x128xf32, #tpu.memory_space<vmem>>, %arg4: memref<1x22x128xf32, #tpu.memory_space<vmem>>) attributes {dimension_semantics = [#tpu.dimension_semantics<parallel>, #tpu.dimension_semantics<parallel>], iteration_bounds = array<i64: 2, 1>, scalar_prefetch = 0 : i64, scratch_operands = 0 : i64, tpu.core_type = #tpu.core_type<tc>, window_params = [{pipeline_mode = #tpu.pipeline_mode<synchronous>, transform_indices = @transform_0, window_bounds = array<i64: 22, 8>}, {transform_indices = @transform_1, window_bounds = array<i64: 1, 8, 128>}, {transform_indices = @transform_2, window_bounds = array<i64: 1, 22, 128>}]} {
    %c0 = arith.constant 0 : index
    %c0_0 = arith.constant 0 : index
    %0 = vector.load %arg2[%c0, %c0_0] : memref<22x8xf32, #tpu.memory_space<vmem>>, vector<22x8xf32>
    %c0_1 = arith.constant 0 : index
    %c0_2 = arith.constant 0 : index
    %c0_3 = arith.constant 0 : index
    %1 = vector.load %arg3[%c0_1, %c0_2, %c0_3] : memref<1x8x128xf32, #tpu.memory_space<vmem>>, vector<1x8x128xf32>
    %2 = vector.shape_cast %1 : vector<1x8x128xf32> to vector<8x128xf32>
    %cst = arith.constant dense<0.000000e+00> : vector<22x128xf32>
    %3 = tpu.matmul %0, %2, %cst {dimension_numbers = #tpu.dot_dimension_numbers<[1], [0], [0], [1], [0, 0, 1, 1], [], []>} : vector<22x8xf32>, vector<8x128xf32>, vector<22x128xf32> -> vector<22x128xf32>
    %c0_4 = arith.constant 0 : index
    %c0_5 = arith.constant 0 : index
    %c0_6 = arith.constant 0 : index
    %4 = vector.load %arg4[%c0_4, %c0_5, %c0_6] : memref<1x22x128xf32, #tpu.memory_space<vmem>>, vector<1x22x128xf32>
    %5 = vector.shape_cast %4 : vector<1x22x128xf32> to vector<22x128xf32>
    %6 = vector.shape_cast %3 : vector<22x128xf32> to vector<1x22x128xf32>
    tpu.vector_store %arg4[%c0_4, %c0_5, %c0_6], %6 {strides = array<i32>} : memref<1x22x128xf32, #tpu.memory_space<vmem>>, vector<1x22x128xf32>,
    return
  }
  func.func @transform_0(%arg0: i32, %arg1: i32) -> (i32, i32) {
    %c0_i32 = arith.constant 0 : i32
    %c0_i32_0 = arith.constant 0 : i32
    %c0_i32_1 = arith.constant 0 : i32
    return %c0_i32, %c0_i32_0 : i32, i32
  }
  func.func @transform_1(%arg0: i32, %arg1: i32) -> (i32, i32, i32) {
    %c0_i32 = arith.constant 0 : i32
    %c0_i32_0 = arith.constant 0 : i32
    return %arg0, %c0_i32, %arg1 : i32, i32, i32
  }
  func.func @transform_2(%arg0: i32, %arg1: i32) -> (i32, i32, i32) {
    %c0_i32 = arith.constant 0 : i32
    %c0_i32_0 = arith.constant 0 : i32
    return %arg0, %c0_i32, %arg1 : i32, i32, i32
  }
}

</mosaic_0001>

<llo_original>
// kernel: tpu_custom_call.1
$region0: #{tpu_custom_call.1}
  #allocation0 [shape = 'u32[]', space=smem, size = 0x4, offset = 0x4, fixed_abs, tag = 'smem constant byte address 0x4 - core index']
  #allocation1 [shape = 'u32[144,128]{1,0:T(1,128)}', space=vmem, size = 0x12000, scoped, tag = 'internal scratch']
  %s0 = inlined_call_operand.vmem [shape: f32[22,8], index: 0, kind: input, shape index: {}]
  %s1 = inlined_call_operand.vmem [shape: f32[2,8,128], index: 1, kind: input, shape index: {}]
  %s2 = inlined_call_operand.vmem [shape: f32[2,22,128], index: 2, kind: output, shape index: {}]
  %s3 = sld [smem:[#allocation0]]
  $region41: #{tpu_custom_call.1} parent=0
    _
  %s5 = ssub.s32 1, %s3
  %s6 = scalar_select 0, %s5, %s3
  loop: start=0, step=1, limit=4
  $region2: #{tpu_custom_call.1} parent=0 // loop_pre_header
    _
  $region3: #{tpu_custom_call.1} parent=0 // loop_header
    %s8 = sphi 0, %s12
    %p9 = scmp.ge.s32.totalorder %s8, 4
    %s15 = sphi 0, %s27
    %s16 = sphi 0, %s23
    %s17 = sphi 0, %s15
    %s18 = sphi 0, %s16
    %s19 = sphi 0, %s17
    %s20 = sphi 0, %s18
    %s28 = sphi 0, %s28
    %s30 = sphi 0, %s28
    %s31 = sphi 0, %s30
    %s45 = sphi 0, %s31
    %s53 = sphi 0, %s55
    %s56 = sphi 0, %s53
    %s57 = sphi 0, %s56
    %s73 = sphi 0, %s57
    %s81 = sphi 0, %s83
    %s84 = sphi 0, %s81
    %s85 = sphi 0, %s84
    %s101 = sphi 0, %s85
  $region4: #{tpu_custom_call.1} parent=0 // loop_header_branch
    %11 = sbr.rel (%p9) target = $region8
  $region5: #{tpu_custom_call.1} parent=0 // loop_body
    %s13 = ssub.s32 %s8, 1
    %s14 = ssub.s32 %s8, 2
    %s21 = sadd.s32 1, %s16
    %p22 = scmp.ge.s32.totalorder %s21, 1
    %s23 = scalar_select %p22, 0, %s21
    %s24 = sadd.s32 1, %s15
    %s25 = scalar_select %p22, %s24, %s15
    %p26 = scmp.ge.s32.totalorder %s25, 2
    %s27 = scalar_select %p26, 0, %s25
    %s29 = sadd.s32 %s28, 1
    %p32 = scmp.eq.s32.totalorder %s8, 1
    %p33 = scmp.ne.s32.totalorder %s28, %s30
    %p34 = scmp.eq.s32.totalorder %s8, 0
    %p35 = por %p33, %p34
    %p36 = scmp.ne.s32.totalorder %s28, %s30
    %p37 = scmp.eq.s32.totalorder %s13, 1
    %p38 = por %p36, %p37
    %p39 = scmp.ne.s32.totalorder %s30, %s31
    %p40 = scmp.eq.s32.totalorder %s13, 0
    %p41 = por %p39, %p40
    %p42 = scmp.ne.s32.totalorder %s30, %s31
    %p43 = scmp.eq.s32.totalorder %s14, 1
    %p44 = por %p42, %p43
    %p46 = scmp.ne.s32.totalorder %s31, %s45
    %p47 = scmp.eq.s32.totalorder %s14, 0
    %p48 = por %p46, %p47
    %s49 = ssub.s32 %s15, %s27
    %s50 = ssub.s32 %s16, %s23
    %s51 = sor.u32 %s49, %s50
    %p52 = scmp.eq.s32.totalorder %s51, 0
    %s54 = sadd.s32 %s53, 1
    %s55 = scalar_select %p52, %s53, %s54
    %p58 = pneg %p52
    %p59 = scmp.eq.s32.totalorder %s8, 1
    %p60 = por %p58, %p59
    %p61 = scmp.ne.s32.totalorder %s53, %s56
    %p62 = scmp.eq.s32.totalorder %s8, 0
    %p63 = por %p61, %p62
    %p64 = scmp.ne.s32.totalorder %s53, %s56
    %p65 = scmp.eq.s32.totalorder %s13, 1
    %p66 = por %p64, %p65
    %p67 = scmp.ne.s32.totalorder %s56, %s57
    %p68 = scmp.eq.s32.totalorder %s13, 0
    %p69 = por %p67, %p68
    %p70 = scmp.ne.s32.totalorder %s56, %s57
    %p71 = scmp.eq.s32.totalorder %s14, 1
    %p72 = por %p70, %p71
    %p74 = scmp.ne.s32.totalorder %s57, %s73
    %p75 = scmp.eq.s32.totalorder %s14, 0
    %p76 = por %p74, %p75
    %s77 = ssub.s32 %s15, %s27
    %s78 = ssub.s32 %s16, %s23
    %s79 = sor.u32 %s77, %s78
    %p80 = scmp.eq.s32.totalorder %s79, 0
    %s82 = sadd.s32 %s81, 1
    %s83 = scalar_select %p80, %s81, %s82
    %p86 = pneg %p80
    %p87 = scmp.eq.s32.totalorder %s8, 1
    %p88 = por %p86, %p87
    %p89 = scmp.ne.s32.totalorder %s81, %s84
    %p90 = scmp.eq.s32.totalorder %s8, 0
    %p91 = por %p89, %p90
    %p92 = scmp.ne.s32.totalorder %s81, %s84
    %p93 = scmp.eq.s32.totalorder %s13, 1
    %p94 = por %p92, %p93
    %p95 = scmp.ne.s32.totalorder %s84, %s85
    %p96 = scmp.eq.s32.totalorder %s13, 0
    %p97 = por %p95, %p96
    %p98 = scmp.ne.s32.totalorder %s84, %s85
    %p99 = scmp.eq.s32.totalorder %s14, 1
    %p100 = por %p98, %p99
    %p102 = scmp.ne.s32.totalorder %s85, %s101
    %p103 = scmp.eq.s32.totalorder %s14, 0
    %p104 = por %p102, %p103
    %p105 = scmp.le.s32.totalorder 1, %s8
    %p106 = scmp.lt.s32.totalorder %s8, 3
    %p107 = pnand %p105, %p106
    %p108 = pneg %p107
    // Predicated region
    $region9: #{tpu_custom_call.1} parent=5 // pred_check
      _
    $region10: #{tpu_custom_call.1} parent=5 // pred_check_branch
      %110 = sbr.rel (%p107) target = $region12
    $region11: #{tpu_custom_call.1} parent=5 // pred_region
      %s111 = ssub.s32 %s8, 1
      // Predicated region
      $region13: #{tpu_custom_call.1} parent=11 // pred_check
        %p112 = pneg %p41
      $region14: #{tpu_custom_call.1} parent=11 // pred_check_branch
        %114 = sbr.rel (%p112) target = $region16
      $region15: #{tpu_custom_call.1} parent=11 // pred_region
        _
      $region16: #{tpu_custom_call.1} parent=11 // pred_fallthru
        _
    $region12: #{tpu_custom_call.1} parent=5 // pred_fallthru
      _
    %p115 = scmp.lt.s32.totalorder %s8, 2
    // Predicated region
    $region17: #{tpu_custom_call.1} parent=5 // pred_check
      %p116 = pneg %p115
    $region18: #{tpu_custom_call.1} parent=5 // pred_check_branch
      %118 = sbr.rel (%p116) target = $region20
    $region19: #{tpu_custom_call.1} parent=5 // pred_region
      // Predicated region
      $region21: #{tpu_custom_call.1} parent=19 // pred_check
        %p119 = pneg %p63
      $region22: #{tpu_custom_call.1} parent=19 // pred_check_branch
        %121 = sbr.rel (%p119) target = $region24
      $region23: #{tpu_custom_call.1} parent=19 // pred_region
        %p122 = scmp.lt.s32.totalorder %s15, 1
        %s123 = scalar_select %p122, %s15, 1
        %p124 = scmp.lt.s32.totalorder %s16, 0
        %s125 = scalar_select %p124, %s16, 0
        %s126 = sadd.s32 %s125, %s123
        %s127 = smul.addr %s126, 8
        %s128 = scalar_lea.vmem %s1, %s127
      $region24: #{tpu_custom_call.1} parent=19 // pred_fallthru
        _
    $region20: #{tpu_custom_call.1} parent=5 // pred_fallthru
      _
    %p129 = scmp.le.s32.totalorder 1, %s8
    %p130 = scmp.lt.s32.totalorder %s8, 3
    %p131 = pnand %p129, %p130
    %p132 = pneg %p131
    // Predicated region
    $region25: #{tpu_custom_call.1} parent=5 // pred_check
      _
    $region26: #{tpu_custom_call.1} parent=5 // pred_check_branch
      %134 = sbr.rel (%p131) target = $region28
    $region27: #{tpu_custom_call.1} parent=5 // pred_region
      %s135 = ssub.s32 %s8, 1
      %p136 = pneg %p41
      %p137 = pneg %p38
      %p138 = scmp.lt.s32.totalorder %s17, 1
      %s139 = scalar_select %p138, %s17, 1
      %p140 = scmp.lt.s32.totalorder %s18, 0
      %s141 = scalar_select %p140, %s18, 0
      %s142 = sadd.s32 %s141, %s139
      %s143 = smul.addr %s142, 8
      %s144 = scalar_lea.vmem %s1, %s143
      %p145 = pneg %p69
      %p146 = pneg %p66
      %p147 = pneg %p97
      %p148 = pneg %p94
      %p149 = scmp.lt.s32.totalorder %s17, 1
      %s150 = scalar_select %p149, %s17, 1
      %p151 = scmp.lt.s32.totalorder %s18, 0
      %s152 = scalar_select %p151, %s18, 0
      %s153 = smul.addr %s150, 3
      %s154 = sadd.s32 %s152, %s153
      %s155 = smul.addr %s154, 8
      %s156 = scalar_lea.vmem %s2, %s155
      %p157 = scmp.lt.s32.totalorder %s17, 1
      %s158 = scalar_select %p157, %s17, 1
      %p159 = scmp.lt.s32.totalorder %s18, 0
      %s160 = scalar_select %p159, %s18, 0
      %s161 = sadd.s32 %s160, %s158
      %s162 = smul.addr %s161, 8
      %s163 = scalar_lea.vmem %s1, %s162
      %p164 = scmp.lt.s32.totalorder %s17, 1
      %s165 = scalar_select %p164, %s17, 1
      %p166 = scmp.lt.s32.totalorder %s18, 0
      %s167 = scalar_select %p166, %s18, 0
      %s168 = smul.addr %s165, 3
      %s169 = sadd.s32 %s167, %s168
      %s170 = smul.addr %s169, 8
      %s171 = scalar_lea.vmem %s2, %s170
      %v172 = vld [vmem:[%s0] sm:$0xff]
      %v173 = vld [vmem:[%s0 + $0x8] sm:$0xff]
      %v174 = vld [vmem:[%s0 + $0x10] sm:$0x3f]
      %v175 = vld [vmem:[%s163] sm:$0xff]
      %vm176 = vcmask 64512
      %v178 = vsel %vm176, %v172, 0
      %v181 = vsel %vm176, %v173, 0
      %v184 = vsel %vm176, %v174, 0
      %186 = vmatprep.subr.mxu0 0.0
      %187 = vmatpush1.msra.mxu0 %v175
      %188 = vmatprep.subr.mxu0 0.0
      %189 = vmatpush1.msra.mxu0 0.0
      %190 = vmatprep.subr.mxu0 0.0
      %191 = vmatpush1.msra.mxu0 0.0
      %192 = vmatprep.subr.mxu0 0.0
      %193 = vmatpush1.msra.mxu0 0.0
      %194 = vmatprep.subr.mxu0 0.0
      %195 = vmatpush1.msra.mxu0 0.0
      %196 = vmatprep.subr.mxu0 0.0
      %197 = vmatpush1.msra.mxu0 0.0
      %198 = vmatprep.subr.mxu0 0.0
      %199 = vmatpush1.msra.mxu0 0.0
      %200 = vmatprep.subr.mxu0 0.0
      %201 = vmatpush1.msra.mxu0 0.0
      %202 = vmatprep.subr.mxu0 0.0
      %203 = vmatpush1.msra.mxu0 0.0
      %204 = vmatprep.subr.mxu0 0.0
      %205 = vmatpush1.msra.mxu0 0.0
      %206 = vmatprep.subr.mxu0 0.0
      %207 = vmatpush1.msra.mxu0 0.0
      %208 = vmatprep.subr.mxu0 0.0
      %209 = vmatpush1.msra.mxu0 0.0
      %210 = vmatprep.subr.mxu0 0.0
      %211 = vmatpush1.msra.mxu0 0.0
      %212 = vmatprep.subr.mxu0 0.0
      %213 = vmatpush1.msra.mxu0 0.0
      %214 = vmatprep.subr.mxu0 0.0
      %215 = vmatpush1.msra.mxu0 0.0
      %216 = vmatprep.subr.mxu0 0.0
      %217 = vmatpush1.msra.mxu0 0.0
      %218 = vmatprep.subr.mxu0 0.0
      %219 = vmatpush1.msra.mxu0 0.0
      %220 = vmatprep.subr.mxu0 0.0
      %221 = vmatpush1.msra.mxu0 0.0
      %222 = vmatprep.subr.mxu0 0.0
      %223 = vmatpush1.msra.mxu0 0.0
      %224 = vmatprep.subr.mxu0 0.0
      %225 = vmatpush1.msra.mxu0 0.0
      %226 = vmatprep.subr.mxu0 0.0
      %227 = vmatpush1.msra.mxu0 0.0
      %228 = vmatprep.subr.mxu0 0.0
      %229 = vmatpush1.msra.mxu0 0.0
      %230 = vmatprep.subr.mxu0 0.0
      %231 = vmatpush1.msra.mxu0 0.0
      %232 = vmatprep.subr.mxu0 0.0
      %233 = vmatpush1.msra.mxu0 0.0
      %234 = vmatprep.subr.mxu0 0.0
      %235 = vmatpush1.msra.mxu0 0.0
      %236 = vmatprep.subr.mxu0 0.0
      %237 = vmatpush1.msra.mxu0 0.0
      %238 = vmatprep.subr.mxu0 0.0
      %239 = vmatpush1.msra.mxu0 0.0
      %240 = vmatprep.subr.mxu0 0.0
      %241 = vmatpush1.msra.mxu0 0.0
      %242 = vmatprep.subr.mxu0 0.0
      %243 = vmatpush1.msra.mxu0 0.0
      %244 = vmatprep.subr.mxu0 0.0
      %245 = vmatpush1.msra.mxu0 0.0
      %246 = vmatprep.subr.mxu0 0.0
      %247 = vmatpush1.msra.mxu0 0.0
      %248 = vmatprep.subr.mxu0 0.0
      %249 = vmatpush1.msra.mxu0 0.0
      %250 = vmatprep.mubr.f32.mxu0 0.0
      %251 = vmatmul.mubr.f32.gmra.mrb[0].mxu0 %v178
      %v252 = vpop.f32.mrb[0].mxu0
      %v253 = vadd.f32 0.0, %v252
      %v254 = vpop.f32.mrb[0].mxu0
      %255 = vmatprep.mubr.f32.mxu0 0.0
      %256 = vmatmul.mubr.f32.gmra.mrb[0].mxu0 %v181
      %v257 = vpop.f32.mrb[0].mxu0
      %v258 = vadd.f32 0.0, %v257
      %v259 = vpop.f32.mrb[0].mxu0
      %260 = vmatprep.mubr.f32.mxu0 0.0
      %261 = vmatmul.mubr.f32.gmra.mrb[0].mxu0 %v184
      %v262 = vpop.f32.mrb[0].mxu0
      %v263 = vadd.f32 0.0, %v262
      %v264 = vpop.f32.mrb[0].mxu0
      %265 = vdwg.mxu0
      %266 = vst [vmem:[%s171] sm:$0xff] %v253
      %267 = vst [vmem:[%s171 + $0x8] sm:$0xff] %v258
      %268 = vst [vmem:[%s171 + $0x10] sm:$0x3f] %v263
      %p269 = scmp.lt.s32.totalorder %s17, 1
      %s270 = scalar_select %p269, %s17, 1
      %p271 = scmp.lt.s32.totalorder %s18, 0
      %s272 = scalar_select %p271, %s18, 0
      %s273 = smul.addr %s270, 3
      %s274 = sadd.s32 %s272, %s273
      %s275 = smul.addr %s274, 8
      %s276 = scalar_lea.vmem %s2, %s275
      // Predicated region
      $region29: #{tpu_custom_call.1} parent=27 // pred_check
        %p277 = pneg %p94
      $region30: #{tpu_custom_call.1} parent=27 // pred_check_branch
        %279 = sbr.rel (%p277) target = $region32
      $region31: #{tpu_custom_call.1} parent=27 // pred_region
        _
      $region32: #{tpu_custom_call.1} parent=27 // pred_fallthru
        _
    $region28: #{tpu_custom_call.1} parent=5 // pred_fallthru
      _
    %p280 = scmp.le.s32.totalorder 2, %s8
    // Predicated region
    $region33: #{tpu_custom_call.1} parent=5 // pred_check
      %p281 = pneg %p280
    $region34: #{tpu_custom_call.1} parent=5 // pred_check_branch
      %283 = sbr.rel (%p281) target = $region36
    $region35: #{tpu_custom_call.1} parent=5 // pred_region
      %s284 = ssub.s32 %s8, 2
      // Predicated region
      $region37: #{tpu_custom_call.1} parent=35 // pred_check
        %p285 = pneg %p100
      $region38: #{tpu_custom_call.1} parent=35 // pred_check_branch
        %287 = sbr.rel (%p285) target = $region40
      $region39: #{tpu_custom_call.1} parent=35 // pred_region
        %p288 = scmp.lt.s32.totalorder %s19, 1
        %s289 = scalar_select %p288, %s19, 1
        %p290 = scmp.lt.s32.totalorder %s20, 0
        %s291 = scalar_select %p290, %s20, 0
        %s292 = smul.addr %s289, 3
        %s293 = sadd.s32 %s291, %s292
        %s294 = smul.addr %s293, 8
        %s295 = scalar_lea.vmem %s2, %s294
      $region40: #{tpu_custom_call.1} parent=35 // pred_fallthru
        _
    $region36: #{tpu_custom_call.1} parent=5 // pred_fallthru
      _
  $region6: #{tpu_custom_call.1} parent=0 // loop_footer
    %s12 = sadd.s32 1, %s8
  $region7: #{tpu_custom_call.1} parent=0 // loop_footer_branch
    %7 = sbr.rel target = $region3
  $region8: #{tpu_custom_call.1} parent=0 // loop_exit
    _

</llo_original>
